<compile_context>
chip_gen: v5e
topology: v5e:2x2
jax: 0.10.0
libtpu: 0.0.40
codegen_flags: <defaults>
</compile_context>

<pallas_src>
import functools

import jax
import jax.numpy as jnp
from jax.experimental import pallas as pl
from jax.experimental.pallas import tpu as pltpu

_LANE = 128


def _round_up(n, m):
    return ((n + m - 1) // m) * m


def _mlp_kernel(num_layers, use_sig, *refs):
    """Fused MLP kernel.

    refs = (x_ref, w0_ref, b0_ref, ..., w{L-1}_ref, b{L-1}_ref, o_ref).
    Every layer except the last is followed by a ReLU; the last is the logits
    projection, optionally followed by tanh.
    """
    x_ref = refs[0]
    o_ref = refs[-1]
    wb_refs = refs[1:-1]

    h = x_ref[...].astype(jnp.float32)
    for idx in range(num_layers):
        w = wb_refs[2 * idx][...]          # bf16 [in, out]
        b = wb_refs[2 * idx + 1][...]      # f32  [1, out]
        # bf16 operands into the MXU, f32 accumulate; elementwise stays f32.
        h = jnp.dot(h.astype(jnp.bfloat16), w,
                    preferred_element_type=jnp.float32) + b
        if idx < num_layers - 1:
            h = jnp.maximum(h, 0.0)        # ReLU on hidden layers only
    if use_sig:
        h = jnp.tanh(h)
    o_ref[...] = h.astype(o_ref.dtype)


def prepare_mlp_params(params):
    """One-time prep: cast weights to bf16 (MXU-native feed) and pad the
    logits layer to a lane-dense (multiple of 128) output width.

    Args:
      params: list of (W[in, out] f32, b[out] or [1, out] f32).
    Returns:
      (prepped_params, out_size) where prepped_params is a list of
      (W_bf16[in, out(_padded)], b_f32[1, out(_padded)]).
    """
    out_size = params[-1][0].shape[1]
    out_pad = _round_up(out_size, _LANE)
    last = len(params) - 1
    prepped = []
    for li, (w, b) in enumerate(params):
        b = jnp.reshape(b, (1, -1)).astype(jnp.float32)
        if li == last and out_pad != out_size:
            w = jnp.pad(w, ((0, 0), (0, out_pad - out_size)))
            b = jnp.pad(b, ((0, 0), (0, out_pad - out_size)))
        prepped.append((w.astype(jnp.bfloat16), b))
    return prepped, out_size


def mlp_forward(x, prepped_params, out_size, *, use_sig=True, batch_tile=256):
    """Run the MLP forward pass with a single fused Pallas kernel.

    Args:
      x: [batch, input_size] float32.
      prepped_params: output of prepare_mlp_params.
      out_size: true (unpadded) logits width.
      use_sig: apply tanh to the logits (matches MLP(use_sig=True)).
      batch_tile: rows per grid step (multiple of 8 recommended).
    """
    batch, in_size = x.shape
    num_layers = len(prepped_params)
    out_pad = prepped_params[-1][0].shape[1]

    # Batch tile: multiple of 8 sublanes (f32 sublane packing), capped at batch.
    tb = min(batch_tile, batch)
    if batch >= 8:
        tb = max(8, (tb // 8) * 8)
    grid = (pl.cdiv(batch, tb),)

    # x / o are tiled over the batch; weights & biases are grid-invariant so a
    # single whole-array VMEM copy is enough (no redundant double buffer).
    in_specs = [pl.BlockSpec((tb, in_size), lambda i: (i, 0))]
    flat_args = [x]
    for w, b in prepped_params:
        in_specs.append(pl.BlockSpec(memory_space=pltpu.MemorySpace.VMEM))
        in_specs.append(pl.BlockSpec(memory_space=pltpu.MemorySpace.VMEM))
        flat_args.append(w)
        flat_args.append(b)

    out_spec = pl.BlockSpec((tb, out_pad), lambda i: (i, 0))

    # VMEM budget: double-buffered x/o tiles + single-copy weights/biases
    # + f32 intermediates, with headroom; clamped to fit v7x's 64 MiB.
    itemsize = jnp.dtype(x.dtype).itemsize
    bytes_x = tb * in_size * itemsize
    bytes_o = tb * out_pad * 4
    bytes_wb = sum(w.size * w.dtype.itemsize + b.size * b.dtype.itemsize
                   for w, b in prepped_params)
    widest = max([in_size] + [w.shape[1] for w, _ in prepped_params])
    bytes_h = tb * widest * 4
    need = 2 * (bytes_x + bytes_o) + bytes_wb + 4 * bytes_h + (2 << 20)
    vmem_limit = int(min(max(need, 16 << 20), 64 << 20))

    out = pl.pallas_call(
        functools.partial(_mlp_kernel, num_layers, use_sig),
        out_shape=jax.ShapeDtypeStruct((batch, out_pad), jnp.float32),
        grid=grid,
        in_specs=in_specs,
        out_specs=out_spec,
        compiler_params=pltpu.CompilerParams(
            dimension_semantics=("parallel",),
            vmem_limit_bytes=vmem_limit),
    )(*flat_args)

    # Drop the lane-padding columns of the logits.
    return out[:, :out_size]


def init_mlp_params(key, input_size, hidden_size, output_size, num_layers):
    """Deterministic PyTorch-style (uniform +/- 1/sqrt(fan_in)) init.

    Returns a list of (W[in, out], b[1, out]) in forward order:
    input_linear, middle linears (num_layers - 2), logits.
    """
    if num_layers == 1:
        dims = [(input_size, output_size)]
    else:
        dims = [(input_size, hidden_size)]
        dims += [(hidden_size, hidden_size)] * (num_layers - 2)
        dims += [(hidden_size, output_size)]

    params = []
    for fan_in, fan_out in dims:
        key, kw, kb = jax.random.split(key, 3)
        bound = 1.0 / jnp.sqrt(jnp.float32(fan_in))
        w = jax.random.uniform(kw, (fan_in, fan_out), jnp.float32, -bound, bound)
        b = jax.random.uniform(kb, (1, fan_out), jnp.float32, -bound, bound)
        params.append((w, b))
    return params


def mlp_reference(x, params, use_sig=True):
    """Pure-JAX f32 reference for correctness checking."""
    h = x
    for idx, (w, b) in enumerate(params):
        h = h @ w + b
        if idx < len(params) - 1:
            h = jnp.maximum(h, 0.0)
    return jnp.tanh(h) if use_sig else h


if __name__ == "__main__":
    # Module-consistent shapes; batch large enough for a multi-step grid.
    batch = 512
    input_size = 32
    hidden_size = input_size // 2   # default hidden = input_size / 2
    output_size = 8                 # stands in for Transition_num
    num_layers = 3                  # stands in for MLP_LAYERS (>= 2 path)

    key = jax.random.PRNGKey(0)
    key, kx = jax.random.split(key)
    x = jax.random.normal(kx, (batch, input_size), jnp.float32)

    params = init_mlp_params(key, input_size, hidden_size, output_size, num_layers)
    prepped, out_size = prepare_mlp_params(params)

    # batch_tile=128 -> 4-step "parallel" grid (pipelined, megacore-shardable).
    out = mlp_forward(x, prepped, out_size, use_sig=True, batch_tile=128)
    out = jax.block_until_ready(out)

    ref = mlp_reference(x, params, use_sig=True)
    assert out.shape == (batch, output_size)
    # bf16 MXU feeds (f32 accumulate) vs full-f32 reference: allow ~1e-2 slack.
    assert jnp.allclose(out, ref, atol=2e-2, rtol=2e-2), "mismatch vs reference"

    print("KERNEL_OK")
</pallas_src>

<mosaic_0001>
module attributes {stable_mosaic.version = 11 : i64} {
  func.func @_mlp_kernel(%arg0: i32, %arg1: memref<128x32xf32, #tpu.memory_space<vmem>>, %arg2: memref<32x16xbf16, #tpu.memory_space<vmem>>, %arg3: memref<1x16xf32, #tpu.memory_space<vmem>>, %arg4: memref<16x16xbf16, #tpu.memory_space<vmem>>, %arg5: memref<1x16xf32, #tpu.memory_space<vmem>>, %arg6: memref<16x128xbf16, #tpu.memory_space<vmem>>, %arg7: memref<1x128xf32, #tpu.memory_space<vmem>>, %arg8: memref<128x128xf32, #tpu.memory_space<vmem>>) attributes {dimension_semantics = [#tpu.dimension_semantics<parallel>], iteration_bounds = array<i64: 4>, scalar_prefetch = 0 : i64, scratch_operands = 0 : i64, tpu.core_type = #tpu.core_type<tc>, window_params = [{transform_indices = @transform_0, window_bounds = array<i64: 128, 32>}, {pipeline_mode = #tpu.pipeline_mode<synchronous>, transform_indices = @transform_1, window_bounds = array<i64: 32, 16>}, {pipeline_mode = #tpu.pipeline_mode<synchronous>, transform_indices = @transform_2, window_bounds = array<i64: 1, 16>}, {pipeline_mode = #tpu.pipeline_mode<synchronous>, transform_indices = @transform_3, window_bounds = array<i64: 16, 16>}, {pipeline_mode = #tpu.pipeline_mode<synchronous>, transform_indices = @transform_4, window_bounds = array<i64: 1, 16>}, {pipeline_mode = #tpu.pipeline_mode<synchronous>, transform_indices = @transform_5, window_bounds = array<i64: 16, 128>}, {pipeline_mode = #tpu.pipeline_mode<synchronous>, transform_indices = @transform_6, window_bounds = array<i64: 1, 128>}, {transform_indices = @transform_7, window_bounds = array<i64: 128, 128>}]} {
    %c0 = arith.constant 0 : index
    %c0_0 = arith.constant 0 : index
    %0 = vector.load %arg1[%c0, %c0_0] : memref<128x32xf32, #tpu.memory_space<vmem>>, vector<128x32xf32>
    %c0_1 = arith.constant 0 : index
    %c0_2 = arith.constant 0 : index
    %1 = vector.load %arg2[%c0_1, %c0_2] : memref<32x16xbf16, #tpu.memory_space<vmem>>, vector<32x16xbf16>
    %c0_3 = arith.constant 0 : index
    %c0_4 = arith.constant 0 : index
    %2 = vector.load %arg3[%c0_3, %c0_4] : memref<1x16xf32, #tpu.memory_space<vmem>>, vector<1x16xf32>
    %3 = arith.truncf %0 : vector<128x32xf32> to vector<128x32xbf16>
    %cst = arith.constant dense<0.000000e+00> : vector<128x16xf32>
    %4 = tpu.matmul %3, %1, %cst {dimension_numbers = #tpu.dot_dimension_numbers<[1], [0], [0], [1], [0, 0, 1, 1], [], []>} : vector<128x32xbf16>, vector<32x16xbf16>, vector<128x16xf32> -> vector<128x16xf32>
    %5 = vector.broadcast %2 : vector<1x16xf32> to vector<128x16xf32>
    %6 = arith.addf %4, %5 : vector<128x16xf32>
    %cst_5 = arith.constant 0.000000e+00 : f32
    %7 = vector.broadcast %cst_5 : f32 to vector<128x16xf32>
    %8 = arith.maximumf %6, %7 : vector<128x16xf32>
    %c0_6 = arith.constant 0 : index
    %c0_7 = arith.constant 0 : index
    %9 = vector.load %arg4[%c0_6, %c0_7] : memref<16x16xbf16, #tpu.memory_space<vmem>>, vector<16x16xbf16>
    %c0_8 = arith.constant 0 : index
    %c0_9 = arith.constant 0 : index
    %10 = vector.load %arg5[%c0_8, %c0_9] : memref<1x16xf32, #tpu.memory_space<vmem>>, vector<1x16xf32>
    %11 = arith.truncf %8 : vector<128x16xf32> to vector<128x16xbf16>
    %cst_10 = arith.constant dense<0.000000e+00> : vector<128x16xf32>
    %12 = tpu.matmul %11, %9, %cst_10 {dimension_numbers = #tpu.dot_dimension_numbers<[1], [0], [0], [1], [0, 0, 1, 1], [], []>} : vector<128x16xbf16>, vector<16x16xbf16>, vector<128x16xf32> -> vector<128x16xf32>
    %13 = vector.broadcast %10 : vector<1x16xf32> to vector<128x16xf32>
    %14 = arith.addf %12, %13 : vector<128x16xf32>
    %cst_11 = arith.constant 0.000000e+00 : f32
    %15 = vector.broadcast %cst_11 : f32 to vector<128x16xf32>
    %16 = arith.maximumf %14, %15 : vector<128x16xf32>
    %c0_12 = arith.constant 0 : index
    %c0_13 = arith.constant 0 : index
    %17 = vector.load %arg6[%c0_12, %c0_13] : memref<16x128xbf16, #tpu.memory_space<vmem>>, vector<16x128xbf16>
    %c0_14 = arith.constant 0 : index
    %c0_15 = arith.constant 0 : index
    %18 = vector.load %arg7[%c0_14, %c0_15] : memref<1x128xf32, #tpu.memory_space<vmem>>, vector<1x128xf32>
    %19 = arith.truncf %16 : vector<128x16xf32> to vector<128x16xbf16>
    %cst_16 = arith.constant dense<0.000000e+00> : vector<128x128xf32>
    %20 = tpu.matmul %19, %17, %cst_16 {dimension_numbers = #tpu.dot_dimension_numbers<[1], [0], [0], [1], [0, 0, 1, 1], [], []>} : vector<128x16xbf16>, vector<16x128xbf16>, vector<128x128xf32> -> vector<128x128xf32>
    %21 = vector.broadcast %18 : vector<1x128xf32> to vector<128x128xf32>
    %22 = arith.addf %20, %21 : vector<128x128xf32>
    %23 = math.tanh %22 : vector<128x128xf32>
    %c0_17 = arith.constant 0 : index
    %c0_18 = arith.constant 0 : index
    %24 = vector.load %arg8[%c0_17, %c0_18] : memref<128x128xf32, #tpu.memory_space<vmem>>, vector<128x128xf32>
    tpu.vector_store %arg8[%c0_17, %c0_18], %23 {strides = array<i32>} : memref<128x128xf32, #tpu.memory_space<vmem>>, vector<128x128xf32>,
    return
  }
  func.func @transform_0(%arg0: i32) -> (i32, i32) {
    %c0_i32 = arith.constant 0 : i32
    %c0_i32_0 = arith.constant 0 : i32
    return %arg0, %c0_i32 : i32, i32
  }
  func.func @transform_1(%arg0: i32) -> (i32, i32) {
    %c0_i32 = arith.constant 0 : i32
    %c0_i32_0 = arith.constant 0 : i32
    %c0_i32_1 = arith.constant 0 : i32
    return %c0_i32, %c0_i32_0 : i32, i32
  }
  func.func @transform_2(%arg0: i32) -> (i32, i32) {
    %c0_i32 = arith.constant 0 : i32
    %c0_i32_0 = arith.constant 0 : i32
    %c0_i32_1 = arith.constant 0 : i32
    return %c0_i32, %c0_i32_0 : i32, i32
  }
  func.func @transform_3(%arg0: i32) -> (i32, i32) {
    %c0_i32 = arith.constant 0 : i32
    %c0_i32_0 = arith.constant 0 : i32
    %c0_i32_1 = arith.constant 0 : i32
    return %c0_i32, %c0_i32_0 : i32, i32
  }
  func.func @transform_4(%arg0: i32) -> (i32, i32) {
    %c0_i32 = arith.constant 0 : i32
    %c0_i32_0 = arith.constant 0 : i32
    %c0_i32_1 = arith.constant 0 : i32
    return %c0_i32, %c0_i32_0 : i32, i32
  }
  func.func @transform_5(%arg0: i32) -> (i32, i32) {
    %c0_i32 = arith.constant 0 : i32
    %c0_i32_0 = arith.constant 0 : i32
    %c0_i32_1 = arith.constant 0 : i32
    return %c0_i32, %c0_i32_0 : i32, i32
  }
  func.func @transform_6(%arg0: i32) -> (i32, i32) {
    %c0_i32 = arith.constant 0 : i32
    %c0_i32_0 = arith.constant 0 : i32
    %c0_i32_1 = arith.constant 0 : i32
    return %c0_i32, %c0_i32_0 : i32, i32
  }
  func.func @transform_7(%arg0: i32) -> (i32, i32) {
    %c0_i32 = arith.constant 0 : i32
    %c0_i32_0 = arith.constant 0 : i32
    return %arg0, %c0_i32 : i32, i32
  }
}

</mosaic_0001>

<llo_original>
// kernel: tpu_custom_call.1
$region0: #{tpu_custom_call.1}
  #allocation0 [shape = 'u32[]', space=smem, size = 0x4, offset = 0x4, fixed_abs, tag = 'smem constant byte address 0x4 - core index']
  #allocation1 [shape = 'u32[72,128]{1,0:T(1,128)}', space=vmem, size = 0x9000, scoped, tag = 'internal scratch']
  %s0 = inlined_call_operand.vmem [shape: f32[512,32], index: 0, kind: input, shape index: {}]
  %s1 = inlined_call_operand.vmem [shape: bf16[32,16], index: 1, kind: input, shape index: {}]
  %s2 = inlined_call_operand.vmem [shape: f32[1,16], index: 2, kind: input, shape index: {}]
  %s3 = inlined_call_operand.vmem [shape: bf16[16,16], index: 3, kind: input, shape index: {}]
  %s4 = inlined_call_operand.vmem [shape: f32[1,16], index: 4, kind: input, shape index: {}]
  %s5 = inlined_call_operand.vmem [shape: bf16[16,128], index: 5, kind: input, shape index: {}]
  %s6 = inlined_call_operand.vmem [shape: f32[1,128], index: 6, kind: input, shape index: {}]
  %s7 = inlined_call_operand.hbm [shape: f32[512,128], index: 7, kind: output, shape index: {}]
  %s8 = sld [smem:[#allocation0]]
  $region61: #{tpu_custom_call.1} parent=0
    _
  %s10 = ssub.s32 1, %s8
  %s11 = scalar_select 0, %s10, %s8
  $region1: #{tpu_custom_call.1} parent=0
    #allocation2 [shape = 'u8[131072]{0}', space=vmem, size = 0x20000, scoped, tag = 'output window, operand 0']
    #allocation3 [shape = 's32[2]{0}', space=sflag, size = 0x8, scoped, tag = 'scoped memory for tpu_custom_call.1']
    %12 = vsyncpa [#allocation3], 0
    %s13 = scalar_lea.sflag [#allocation3], 1
    %14 = vsyncpa %s13, 0
    loop: start=0, step=1, limit=6
    $region2: #{tpu_custom_call.1} parent=1 // loop_pre_header
      _
    $region3: #{tpu_custom_call.1} parent=1 // loop_header
      %s16 = sphi 0, %s20
      %p17 = scmp.ge.s32.totalorder %s16, 6
      %s26 = sphi 0, %s28
      %s29 = sphi 0, %s26
      %s30 = sphi 0, %s29
      %s46 = sphi 0, %s30
      %s50 = sphi 0, %s50
      %s52 = sphi 0, %s50
      %s53 = sphi 0, %s52
      %s67 = sphi 0, %s53
      %s71 = sphi 0, %s71
      %s73 = sphi 0, %s71
      %s74 = sphi 0, %s73
      %s88 = sphi 0, %s74
      %s92 = sphi 0, %s92
      %s94 = sphi 0, %s92
      %s95 = sphi 0, %s94
      %s109 = sphi 0, %s95
      %s113 = sphi 0, %s113
      %s115 = sphi 0, %s113
      %s116 = sphi 0, %s115
      %s130 = sphi 0, %s116
      %s134 = sphi 0, %s134
      %s136 = sphi 0, %s134
      %s137 = sphi 0, %s136
      %s151 = sphi 0, %s137
      %s155 = sphi 0, %s155
      %s157 = sphi 0, %s155
      %s158 = sphi 0, %s157
      %s172 = sphi 0, %s158
      %s178 = sphi 0, %s180
      %s181 = sphi 0, %s178
      %s182 = sphi 0, %s181
      %s198 = sphi 0, %s182
    $region4: #{tpu_custom_call.1} parent=1 // loop_header_branch
      %19 = sbr.rel (%p17) target = $region8
    $region5: #{tpu_custom_call.1} parent=1 // loop_body
      %s21 = ssub.s32 %s16, 1
      %s22 = ssub.s32 %s16, 2
      %s23 = sadd.s32 %s16, 1
      %s24 = ssub.s32 %s16, %s23
      %p25 = scmp.eq.s32.totalorder %s24, 0
      %s27 = sadd.s32 %s26, 1
      %s28 = scalar_select %p25, %s26, %s27
      %p31 = pneg %p25
      %p32 = scmp.eq.s32.totalorder %s16, 3
      %p33 = por %p31, %p32
      %p34 = scmp.ne.s32.totalorder %s26, %s29
      %p35 = scmp.eq.s32.totalorder %s16, 0
      %p36 = por %p34, %p35
      %p37 = scmp.ne.s32.totalorder %s26, %s29
      %p38 = scmp.eq.s32.totalorder %s21, 3
      %p39 = por %p37, %p38
      %p40 = scmp.ne.s32.totalorder %s29, %s30
      %p41 = scmp.eq.s32.totalorder %s21, 0
      %p42 = por %p40, %p41
      %p43 = scmp.ne.s32.totalorder %s29, %s30
      %p44 = scmp.eq.s32.totalorder %s22, 3
      %p45 = por %p43, %p44
      %p47 = scmp.ne.s32.totalorder %s30, %s46
      %p48 = scmp.eq.s32.totalorder %s22, 0
      %p49 = por %p47, %p48
      %s51 = sadd.s32 %s50, 1
      %p54 = scmp.eq.s32.totalorder %s16, 3
      %p55 = scmp.ne.s32.totalorder %s50, %s52
      %p56 = scmp.eq.s32.totalorder %s16, 0
      %p57 = por %p55, %p56
      %p58 = scmp.ne.s32.totalorder %s50, %s52
      %p59 = scmp.eq.s32.totalorder %s21, 3
      %p60 = por %p58, %p59
      %p61 = scmp.ne.s32.totalorder %s52, %s53
      %p62 = scmp.eq.s32.totalorder %s21, 0
      %p63 = por %p61, %p62
      %p64 = scmp.ne.s32.totalorder %s52, %s53
      %p65 = scmp.eq.s32.totalorder %s22, 3
      %p66 = por %p64, %p65
      %p68 = scmp.ne.s32.totalorder %s53, %s67
      %p69 = scmp.eq.s32.totalorder %s22, 0
      %p70 = por %p68, %p69
      %s72 = sadd.s32 %s71, 1
      %p75 = scmp.eq.s32.totalorder %s16, 3
      %p76 = scmp.ne.s32.totalorder %s71, %s73
      %p77 = scmp.eq.s32.totalorder %s16, 0
      %p78 = por %p76, %p77
      %p79 = scmp.ne.s32.totalorder %s71, %s73
      %p80 = scmp.eq.s32.totalorder %s21, 3
      %p81 = por %p79, %p80
      %p82 = scmp.ne.s32.totalorder %s73, %s74
      %p83 = scmp.eq.s32.totalorder %s21, 0
      %p84 = por %p82, %p83
      %p85 = scmp.ne.s32.totalorder %s73, %s74
      %p86 = scmp.eq.s32.totalorder %s22, 3
      %p87 = por %p85, %p86
      %p89 = scmp.ne.s32.totalorder %s74, %s88
      %p90 = scmp.eq.s32.totalorder %s22, 0
      %p91 = por %p89, %p90
      %s93 = sadd.s32 %s92, 1
      %p96 = scmp.eq.s32.totalorder %s16, 3
      %p97 = scmp.ne.s32.totalorder %s92, %s94
      %p98 = scmp.eq.s32.totalorder %s16, 0
      %p99 = por %p97, %p98
      %p100 = scmp.ne.s32.totalorder %s92, %s94
      %p101 = scmp.eq.s32.totalorder %s21, 3
      %p102 = por %p100, %p101
      %p103 = scmp.ne.s32.totalorder %s94, %s95
      %p104 = scmp.eq.s32.totalorder %s21, 0
      %p105 = por %p103, %p104
      %p106 = scmp.ne.s32.totalorder %s94, %s95
      %p107 = scmp.eq.s32.totalorder %s22, 3
      %p108 = por %p106, %p107
      %p110 = scmp.ne.s32.totalorder %s95, %s109
      %p111 = scmp.eq.s32.totalorder %s22, 0
      %p112 = por %p110, %p111
      %s114 = sadd.s32 %s113, 1
      %p117 = scmp.eq.s32.totalorder %s16, 3
      %p118 = scmp.ne.s32.totalorder %s113, %s115
      %p119 = scmp.eq.s32.totalorder %s16, 0
      %p120 = por %p118, %p119
      %p121 = scmp.ne.s32.totalorder %s113, %s115
      %p122 = scmp.eq.s32.totalorder %s21, 3
      %p123 = por %p121, %p122
      %p124 = scmp.ne.s32.totalorder %s115, %s116
      %p125 = scmp.eq.s32.totalorder %s21, 0
      %p126 = por %p124, %p125
      %p127 = scmp.ne.s32.totalorder %s115, %s116
      %p128 = scmp.eq.s32.totalorder %s22, 3
      %p129 = por %p127, %p128
      %p131 = scmp.ne.s32.totalorder %s116, %s130
      %p132 = scmp.eq.s32.totalorder %s22, 0
      %p133 = por %p131, %p132
      %s135 = sadd.s32 %s134, 1
      %p138 = scmp.eq.s32.totalorder %s16, 3
      %p139 = scmp.ne.s32.totalorder %s134, %s136
      %p140 = scmp.eq.s32.totalorder %s16, 0
      %p141 = por %p139, %p140
      %p142 = scmp.ne.s32.totalorder %s134, %s136
      %p143 = scmp.eq.s32.totalorder %s21, 3
      %p144 = por %p142, %p143
      %p145 = scmp.ne.s32.totalorder %s136, %s137
      %p146 = scmp.eq.s32.totalorder %s21, 0
      %p147 = por %p145, %p146
      %p148 = scmp.ne.s32.totalorder %s136, %s137
      %p149 = scmp.eq.s32.totalorder %s22, 3
      %p150 = por %p148, %p149
      %p152 = scmp.ne.s32.totalorder %s137, %s151
      %p153 = scmp.eq.s32.totalorder %s22, 0
      %p154 = por %p152, %p153
      %s156 = sadd.s32 %s155, 1
      %p159 = scmp.eq.s32.totalorder %s16, 3
      %p160 = scmp.ne.s32.totalorder %s155, %s157
      %p161 = scmp.eq.s32.totalorder %s16, 0
      %p162 = por %p160, %p161
      %p163 = scmp.ne.s32.totalorder %s155, %s157
      %p164 = scmp.eq.s32.totalorder %s21, 3
      %p165 = por %p163, %p164
      %p166 = scmp.ne.s32.totalorder %s157, %s158
      %p167 = scmp.eq.s32.totalorder %s21, 0
      %p168 = por %p166, %p167
      %p169 = scmp.ne.s32.totalorder %s157, %s158
      %p170 = scmp.eq.s32.totalorder %s22, 3
      %p171 = por %p169, %p170
      %p173 = scmp.ne.s32.totalorder %s158, %s172
      %p174 = scmp.eq.s32.totalorder %s22, 0
      %p175 = por %p173, %p174
      %s176 = ssub.s32 %s16, %s23
      %p177 = scmp.eq.s32.totalorder %s176, 0
      %s179 = sadd.s32 %s178, 1
      %s180 = scalar_select %p177, %s178, %s179
      %p183 = pneg %p177
      %p184 = scmp.eq.s32.totalorder %s16, 3
      %p185 = por %p183, %p184
      %p186 = scmp.ne.s32.totalorder %s178, %s181
      %p187 = scmp.eq.s32.totalorder %s16, 0
      %p188 = por %p186, %p187
      %p189 = scmp.ne.s32.totalorder %s178, %s181
      %p190 = scmp.eq.s32.totalorder %s21, 3
      %p191 = por %p189, %p190
      %p192 = scmp.ne.s32.totalorder %s181, %s182
      %p193 = scmp.eq.s32.totalorder %s21, 0
      %p194 = por %p192, %p193
      %p195 = scmp.ne.s32.totalorder %s181, %s182
      %p196 = scmp.eq.s32.totalorder %s22, 3
      %p197 = por %p195, %p196
      %p199 = scmp.ne.s32.totalorder %s182, %s198
      %p200 = scmp.eq.s32.totalorder %s22, 0
      %p201 = por %p199, %p200
      %p202 = scmp.le.s32.totalorder 1, %s16
      %p203 = scmp.lt.s32.totalorder %s16, 5
      %p204 = pnand %p202, %p203
      %p205 = pneg %p204
      // Predicated region
      $region9: #{tpu_custom_call.1} parent=5 // pred_check
        _
      $region10: #{tpu_custom_call.1} parent=5 // pred_check_branch
        %207 = sbr.rel (%p204) target = $region12
      $region11: #{tpu_custom_call.1} parent=5 // pred_region
        %s208 = ssub.s32 %s16, 1
        // Predicated region
        $region13: #{tpu_custom_call.1} parent=11 // pred_check
          %p209 = pneg %p63
        $region14: #{tpu_custom_call.1} parent=11 // pred_check_branch
          %211 = sbr.rel (%p209) target = $region16
        $region15: #{tpu_custom_call.1} parent=11 // pred_region
          _
        $region16: #{tpu_custom_call.1} parent=11 // pred_fallthru
          _
        // Predicated region
        $region17: #{tpu_custom_call.1} parent=11 // pred_check
          %p212 = pneg %p84
        $region18: #{tpu_custom_call.1} parent=11 // pred_check_branch
          %214 = sbr.rel (%p212) target = $region20
        $region19: #{tpu_custom_call.1} parent=11 // pred_region
          _
        $region20: #{tpu_custom_call.1} parent=11 // pred_fallthru
          _
        // Predicated region
        $region21: #{tpu_custom_call.1} parent=11 // pred_check
          %p215 = pneg %p105
        $region22: #{tpu_custom_call.1} parent=11 // pred_check_branch
          %217 = sbr.rel (%p215) target = $region24
        $region23: #{tpu_custom_call.1} parent=11 // pred_region
          _
        $region24: #{tpu_custom_call.1} parent=11 // pred_fallthru
          _
        // Predicated region
        $region25: #{tpu_custom_call.1} parent=11 // pred_check
          %p218 = pneg %p126
        $region26: #{tpu_custom_call.1} parent=11 // pred_check_branch
          %220 = sbr.rel (%p218) target = $region28
        $region27: #{tpu_custom_call.1} parent=11 // pred_region
          _
        $region28: #{tpu_custom_call.1} parent=11 // pred_fallthru
          _
        // Predicated region
        $region29: #{tpu_custom_call.1} parent=11 // pred_check
          %p221 = pneg %p147
        $region30: #{tpu_custom_call.1} parent=11 // pred_check_branch
          %223 = sbr.rel (%p221) target = $region32
        $region31: #{tpu_custom_call.1} parent=11 // pred_region
          _
        $region32: #{tpu_custom_call.1} parent=11 // pred_fallthru
          _
        // Predicated region
        $region33: #{tpu_custom_call.1} parent=11 // pred_check
          %p224 = pneg %p168
        $region34: #{tpu_custom_call.1} parent=11 // pred_check_branch
          %226 = sbr.rel (%p224) target = $region36
        $region35: #{tpu_custom_call.1} parent=11 // pred_region
          _
        $region36: #{tpu_custom_call.1} parent=11 // pred_fallthru
          _
      $region12: #{tpu_custom_call.1} parent=5 // pred_fallthru
        _
      %p227 = scmp.lt.s32.totalorder %s16, 4
      // Predicated region
      $region37: #{tpu_custom_call.1} parent=5 // pred_check
        %p228 = pneg %p227
      $region38: #{tpu_custom_call.1} parent=5 // pred_check_branch
        %230 = sbr.rel (%p228) target = $region40
      $region39: #{tpu_custom_call.1} parent=5 // pred_region
        // Predicated region
        $region41: #{tpu_custom_call.1} parent=39 // pred_check
          %p231 = pneg %p36
        $region42: #{tpu_custom_call.1} parent=39 // pred_check_branch
          %233 = sbr.rel (%p231) target = $region44
        $region43: #{tpu_custom_call.1} parent=39 // pred_region
          %s234 = smul.u32 16, %s16
          %p235 = scmp.lt.s32.totalorder %s234, 63
          %s236 = scalar_select %p235, %s234, 63
          %s237 = smul.addr %s236, 8
          %s238 = scalar_lea.vmem %s0, %s237
          %s239 = smul.u32 16, %s16
        $region44: #{tpu_custom_call.1} parent=39 // pred_fallthru
          _
      $region40: #{tpu_custom_call.1} parent=5 // pred_fallthru
        _
      %p240 = scmp.le.s32.totalorder 1, %s16
      %p241 = scmp.lt.s32.totalorder %s16, 5
      %p242 = pnand %p240, %p241
      %p243 = pneg %p242
      // Predicated region
      $region45: #{tpu_custom_call.1} parent=5 // pred_check
        _
      $region46: #{tpu_custom_call.1} parent=5 // pred_check_branch
        %245 = sbr.rel (%p242) target = $region48
      $region47: #{tpu_custom_call.1} parent=5 // pred_region
        %s246 = ssub.s32 %s16, 1
        %s247 = smul.u32 16, %s21
        %p248 = scmp.lt.s32.totalorder %s247, 63
        %s249 = scalar_select %p248, %s247, 63
        %s250 = smul.addr %s249, 8
        %s251 = scalar_lea.vmem %s0, %s250
        %p252 = pneg %p42
        %p253 = pneg %p39
        %p254 = pneg %p63
        %p255 = pneg %p60
        %p256 = pneg %p84
        %p257 = pneg %p81
        %p258 = pneg %p105
        %p259 = pneg %p102
        %p260 = pneg %p126
        %p261 = pneg %p123
        %p262 = pneg %p147
        %p263 = pneg %p144
        %p264 = pneg %p168
        %p265 = pneg %p165
        %p266 = pneg %p194
        %p267 = pneg %p191
        %s268 = sand.u32 %s181, 1
        %s269 = scalar_lea.sflag [#allocation3], %s268
        %s270 = sand.u32 %s181, 1
        %s271 = smul.addr %s270, 128
        %s272 = scalar_lea.vmem [#allocation2], %s271
        %s273 = smul.u32 16, %s21
        %p274 = scmp.lt.s32.totalorder %s273, 63
        %s275 = scalar_select %p274, %s273, 63
        %s276 = smul.addr %s275, 8
        %s277 = scalar_lea.vmem %s0, %s276
        %s278 = smul.u32 16, %s21
        %s279 = smul.u32 16, %s21
        %v281 = vld [vmem:[%s277] sm:$0xff]
        %v282 = vld [vmem:[%s277 + $0x8] sm:$0xff]
        %v283 = vld [vmem:[%s277 + $0x10] sm:$0xff]
        %v284 = vld [vmem:[%s277 + $0x18] sm:$0xff]
        %v285 = vld [vmem:[%s277 + $0x20] sm:$0xff]
        %v286 = vld [vmem:[%s277 + $0x28] sm:$0xff]
        %v287 = vld [vmem:[%s277 + $0x30] sm:$0xff]
        %v288 = vld [vmem:[%s277 + $0x38] sm:$0xff]
        %v289 = vld [vmem:[%s277 + $0x40] sm:$0xff]
        %v290 = vld [vmem:[%s277 + $0x48] sm:$0xff]
        %v291 = vld [vmem:[%s277 + $0x50] sm:$0xff]
        %v292 = vld [vmem:[%s277 + $0x58] sm:$0xff]
        %v293 = vld [vmem:[%s277 + $0x60] sm:$0xff]
        %v294 = vld [vmem:[%s277 + $0x68] sm:$0xff]
        %v295 = vld [vmem:[%s277 + $0x70] sm:$0xff]
        %v296 = vld [vmem:[%s277 + $0x78] sm:$0xff]
        %v297 = vld [vmem:[%s1] sm:$0xf]
        %v298 = vld [vmem:[%s1 + $0x4] sm:$0xf]
        %v299 = vld [vmem:[%s1 + $0x8] sm:$0xf]
        %v300 = vld [vmem:[%s1 + $0xc] sm:$0xf]
        %v301 = vld [vmem:[%s2] sm:$0x1]
        %v302 = vpack.c.bf16 %v282, %v281
        %v303 = vpack.c.bf16 %v284, %v283
        %v304 = vpack.c.bf16 %v286, %v285
        %v305 = vpack.c.bf16 %v288, %v287
        %v306 = vpack.c.bf16 %v290, %v289
        %v307 = vpack.c.bf16 %v292, %v291
        %v308 = vpack.c.bf16 %v294, %v293
        %v309 = vpack.c.bf16 %v296, %v295
        %v311 = vperm.slane %v301, 0
        %v317 = vunpack.c.l.b16 %v297
        %v318 = vunpack.c.l.b16 %v298
        %v319 = vunpack.c.l.b16 %v299
        %v320 = vunpack.c.l.b16 %v300
        %v321 = vpack.c.b16 %v318, %v317
        %v322 = vpack.c.b16 %v320, %v319
        %vm325 = vcmask 261120
        %v327 = vsel %vm325, %v302, 0
        %v330 = vsel %vm325, %v303, 0
        %v333 = vsel %vm325, %v304, 0
        %v336 = vsel %vm325, %v305, 0
        %v339 = vsel %vm325, %v306, 0
        %v342 = vsel %vm325, %v307, 0
        %v345 = vsel %vm325, %v308, 0
        %v348 = vsel %vm325, %v309, 0
        %350 = vmatpush.bf16.msra.mxu0 0
        %351 = vmatpush.bf16.msra.mxu0 0
        %352 = vmatpush.bf16.msra.mxu0 0
        %353 = vmatpush.bf16.msra.mxu0 0
        %354 = vmatpush.bf16.msra.mxu0 0
        %355 = vmatpush.bf16.msra.mxu0 0
        %356 = vmatpush.bf16.msra.mxu0 %v322
        %357 = vmatpush.bf16.msra.mxu0 %v321
        %358 = vmatmul.bf16.gmra.mxu0 %v327
        %v359 = vpop.f32.mrf.mxu0
        %v360 = vadd.f32 %v311, %v359
        %v361 = vpop.f32.mrf.mxu0
        %v362 = vadd.f32 %v311, %v361
        %363 = vmatmul.bf16.gmra.mxu0 %v330
        %v364 = vpop.f32.mrf.mxu0
        %v365 = vadd.f32 %v311, %v364
        %v366 = vpop.f32.mrf.mxu0
        %v367 = vadd.f32 %v311, %v366
        %368 = vmatmul.bf16.gmra.mxu0 %v333
        %v369 = vpop.f32.mrf.mxu0
        %v370 = vadd.f32 %v311, %v369
        %v371 = vpop.f32.mrf.mxu0
        %v372 = vadd.f32 %v311, %v371
        %373 = vmatmul.bf16.gmra.mxu0 %v336
        %v374 = vpop.f32.mrf.mxu0
        %v375 = vadd.f32 %v311, %v374
        %v376 = vpop.f32.mrf.mxu0
        %v377 = vadd.f32 %v311, %v376
        %378 = vmatmul.bf16.gmra.mxu0 %v339
        %v379 = vpop.f32.mrf.mxu0
        %v380 = vadd.f32 %v311, %v379
        %v381 = vpop.f32.mrf.mxu0
        %v382 = vadd.f32 %v311, %v381
        %383 = vmatmul.bf16.gmra.mxu0 %v342
        %v384 = vpop.f32.mrf.mxu0
        %v385 = vadd.f32 %v311, %v384
        %v386 = vpop.f32.mrf.mxu0
        %v387 = vadd.f32 %v311, %v386
        %388 = vmatmul.bf16.gmra.mxu0 %v345
        %v389 = vpop.f32.mrf.mxu0
        %v390 = vadd.f32 %v311, %v389
        %v391 = vpop.f32.mrf.mxu0
        %v392 = vadd.f32 %v311, %v391
        %393 = vmatmul.bf16.gmra.mxu0 %v348
        %v394 = vpop.f32.mrf.mxu0
        %v395 = vadd.f32 %v311, %v394
        %v396 = vpop.f32.mrf.mxu0
        %v397 = vadd.f32 %v311, %v396
        %398 = vdwg.mxu0
        %v399 = vmax.f32 %v360, 0.0
        %v400 = vmax.f32 %v362, 0.0
        %v401 = vmax.f32 %v365, 0.0
        %v402 = vmax.f32 %v367, 0.0
        %v403 = vmax.f32 %v370, 0.0
        %v404 = vmax.f32 %v372, 0.0
        %v405 = vmax.f32 %v375, 0.0
        %v406 = vmax.f32 %v377, 0.0
        %v407 = vmax.f32 %v380, 0.0
        %v408 = vmax.f32 %v382, 0.0
        %v409 = vmax.f32 %v385, 0.0
        %v410 = vmax.f32 %v387, 0.0
        %v411 = vmax.f32 %v390, 0.0
        %v412 = vmax.f32 %v392, 0.0
        %v413 = vmax.f32 %v395, 0.0
        %v414 = vmax.f32 %v397, 0.0
        %v415 = vld [vmem:[%s3] sm:$0xf]
        %v416 = vld [vmem:[%s3 + $0x4] sm:$0xf]
        %v417 = vld [vmem:[%s4] sm:$0x1]
        %v418 = vpack.c.bf16 %v400, %v399
        %v419 = vpack.c.bf16 %v402, %v401
        %v420 = vpack.c.bf16 %v404, %v403
        %v421 = vpack.c.bf16 %v406, %v405
        %v422 = vpack.c.bf16 %v408, %v407
        %v423 = vpack.c.bf16 %v410, %v409
        %v424 = vpack.c.bf16 %v412, %v411
        %v425 = vpack.c.bf16 %v414, %v413
        %v427 = vperm.slane %v417, 0
        %v431 = vunpack.c.l.b16 %v415
        %v432 = vunpack.c.l.b16 %v416
        %v433 = vpack.c.b16 %v432, %v431
        %vm435 = vcmask 130048
        %v437 = vsel %vm435, %v418, 0
        %v440 = vsel %vm435, %v419, 0
        %v443 = vsel %vm435, %v420, 0
        %v446 = vsel %vm435, %v421, 0
        %v449 = vsel %vm435, %v422, 0
        %v452 = vsel %vm435, %v423, 0
        %v455 = vsel %vm435, %v424, 0
        %v458 = vsel %vm435, %v425, 0
        %460 = vmatpush.bf16.msra.mxu0 0
        %461 = vmatpush.bf16.msra.mxu0 0
        %462 = vmatpush.bf16.msra.mxu0 0
        %463 = vmatpush.bf16.msra.mxu0 0
        %464 = vmatpush.bf16.msra.mxu0 0
        %465 = vmatpush.bf16.msra.mxu0 0
        %466 = vmatpush.bf16.msra.mxu0 0
        %467 = vmatpush.bf16.msra.mxu0 %v433
        %468 = vmatmul.bf16.gmra.mxu0 %v437
        %v469 = vpop.f32.mrf.mxu0
        %v470 = vadd.f32 %v427, %v469
        %v471 = vpop.f32.mrf.mxu0
        %v472 = vadd.f32 %v427, %v471
        %473 = vmatmul.bf16.gmra.mxu0 %v440
        %v474 = vpop.f32.mrf.mxu0
        %v475 = vadd.f32 %v427, %v474
        %v476 = vpop.f32.mrf.mxu0
        %v477 = vadd.f32 %v427, %v476
        %478 = vmatmul.bf16.gmra.mxu0 %v443
        %v479 = vpop.f32.mrf.mxu0
        %v480 = vadd.f32 %v427, %v479
        %v481 = vpop.f32.mrf.mxu0
        %v482 = vadd.f32 %v427, %v481
        %483 = vmatmul.bf16.gmra.mxu0 %v446
        %v484 = vpop.f32.mrf.mxu0
        %v485 = vadd.f32 %v427, %v484
        %v486 = vpop.f32.mrf.mxu0
        %v487 = vadd.f32 %v427, %v486
        %488 = vmatmul.bf16.gmra.mxu0 %v449
        %v489 = vpop.f32.mrf.mxu0
        %v490 = vadd.f32 %v427, %v489
        %v491 = vpop.f32.mrf.mxu0
        %v492 = vadd.f32 %v427, %v491
        %493 = vmatmul.bf16.gmra.mxu0 %v452
        %v494 = vpop.f32.mrf.mxu0
        %v495 = vadd.f32 %v427, %v494
        %v496 = vpop.f32.mrf.mxu0
        %v497 = vadd.f32 %v427, %v496
        %498 = vmatmul.bf16.gmra.mxu0 %v455
        %v499 = vpop.f32.mrf.mxu0
        %v500 = vadd.f32 %v427, %v499
        %v501 = vpop.f32.mrf.mxu0
        %v502 = vadd.f32 %v427, %v501
        %503 = vmatmul.bf16.gmra.mxu0 %v458
        %v504 = vpop.f32.mrf.mxu0
        %v505 = vadd.f32 %v427, %v504
        %v506 = vpop.f32.mrf.mxu0
        %v507 = vadd.f32 %v427, %v506
        %508 = vdwg.mxu0
        %v509 = vmax.f32 %v470, 0.0
        %v510 = vmax.f32 %v472, 0.0
        %v511 = vmax.f32 %v475, 0.0
        %v512 = vmax.f32 %v477, 0.0
        %v513 = vmax.f32 %v480, 0.0
        %v514 = vmax.f32 %v482, 0.0
        %v515 = vmax.f32 %v485, 0.0
        %v516 = vmax.f32 %v487, 0.0
        %v517 = vmax.f32 %v490, 0.0
        %v518 = vmax.f32 %v492, 0.0
        %v519 = vmax.f32 %v495, 0.0
        %v520 = vmax.f32 %v497, 0.0
        %v521 = vmax.f32 %v500, 0.0
        %v522 = vmax.f32 %v502, 0.0
        %v523 = vmax.f32 %v505, 0.0
        %v524 = vmax.f32 %v507, 0.0
        %v525 = vld [vmem:[%s5] sm:$0xf]
        %v526 = vld [vmem:[%s5 + $0x4] sm:$0xf]
        %v527 = vld [vmem:[%s6] sm:$0x1]
        %v528 = vpack.c.bf16 %v510, %v509
        %v529 = vpack.c.bf16 %v512, %v511
        %v530 = vpack.c.bf16 %v514, %v513
        %v531 = vpack.c.bf16 %v516, %v515
        %v532 = vpack.c.bf16 %v518, %v517
        %v533 = vpack.c.bf16 %v520, %v519
        %v534 = vpack.c.bf16 %v522, %v521
        %v535 = vpack.c.bf16 %v524, %v523
        %v537 = vperm.slane %v527, 0
        %v541 = vunpack.c.l.b16 %v525
        %v542 = vunpack.c.l.b16 %v526
        %v543 = vpack.c.b16 %v542, %v541
        %v546 = vsel %vm435, %v528, 0
        %v549 = vsel %vm435, %v529, 0
        %v552 = vsel %vm435, %v530, 0
        %v555 = vsel %vm435, %v531, 0
        %v558 = vsel %vm435, %v532, 0
        %v561 = vsel %vm435, %v533, 0
        %v564 = vsel %vm435, %v534, 0
        %v567 = vsel %vm435, %v535, 0
        %569 = vmatpush.bf16.msra.mxu0 0
        %570 = vmatpush.bf16.msra.mxu0 0
        %571 = vmatpush.bf16.msra.mxu0 0
        %572 = vmatpush.bf16.msra.mxu0 0
        %573 = vmatpush.bf16.msra.mxu0 0
        %574 = vmatpush.bf16.msra.mxu0 0
        %575 = vmatpush.bf16.msra.mxu0 0
        %576 = vmatpush.bf16.msra.mxu0 %v543
        %577 = vmatmul.bf16.gmra.mxu0 %v546
        %v578 = vpop.f32.mrf.mxu0
        %v579 = vadd.f32 %v537, %v578
        %v580 = vpop.f32.mrf.mxu0
        %v581 = vadd.f32 %v537, %v580
        %582 = vmatmul.bf16.gmra.mxu0 %v549
        %v583 = vpop.f32.mrf.mxu0
        %v584 = vadd.f32 %v537, %v583
        %v585 = vpop.f32.mrf.mxu0
        %v586 = vadd.f32 %v537, %v585
        %587 = vmatmul.bf16.gmra.mxu0 %v552
        %v588 = vpop.f32.mrf.mxu0
        %v589 = vadd.f32 %v537, %v588
        %v590 = vpop.f32.mrf.mxu0
        %v591 = vadd.f32 %v537, %v590
        %592 = vmatmul.bf16.gmra.mxu0 %v555
        %v593 = vpop.f32.mrf.mxu0
        %v594 = vadd.f32 %v537, %v593
        %v595 = vpop.f32.mrf.mxu0
        %v596 = vadd.f32 %v537, %v595
        %597 = vmatmul.bf16.gmra.mxu0 %v558
        %v598 = vpop.f32.mrf.mxu0
        %v599 = vadd.f32 %v537, %v598
        %v600 = vpop.f32.mrf.mxu0
        %v601 = vadd.f32 %v537, %v600
        %602 = vmatmul.bf16.gmra.mxu0 %v561
        %v603 = vpop.f32.mrf.mxu0
        %v604 = vadd.f32 %v537, %v603
        %v605 = vpop.f32.mrf.mxu0
        %v606 = vadd.f32 %v537, %v605
        %607 = vmatmul.bf16.gmra.mxu0 %v564
        %v608 = vpop.f32.mrf.mxu0
        %v609 = vadd.f32 %v537, %v608
        %v610 = vpop.f32.mrf.mxu0
        %v611 = vadd.f32 %v537, %v610
        %612 = vmatmul.bf16.gmra.mxu0 %v567
        %v613 = vpop.f32.mrf.mxu0
        %v614 = vadd.f32 %v537, %v613
        %v615 = vpop.f32.mrf.mxu0
        %v616 = vadd.f32 %v537, %v615
        %617 = vdwg.mxu0
        %v618 = vtanh.pop %v579
        %v619 = vtanh.pop %v581
        %v620 = vtanh.pop %v584
        %v621 = vtanh.pop %v586
        %v622 = vtanh.pop %v589
        %v623 = vtanh.pop %v591
        %v624 = vtanh.pop %v594
        %v625 = vtanh.pop %v596
        %v626 = vtanh.pop %v599
        %v627 = vtanh.pop %v601
        %v628 = vtanh.pop %v604
        %v629 = vtanh.pop %v606
        %v630 = vtanh.pop %v609
        %v631 = vtanh.pop %v611
        %v632 = vtanh.pop %v614
        %v633 = vtanh.pop %v616
        %634 = vst [vmem:[%s272] sm:$0xff] %v618
        %635 = vst [vmem:[%s272 + $0x8] sm:$0xff] %v619
        %636 = vst [vmem:[%s272 + $0x10] sm:$0xff] %v620
        %637 = vst [vmem:[%s272 + $0x18] sm:$0xff] %v621
        %638 = vst [vmem:[%s272 + $0x20] sm:$0xff] %v622
        %639 = vst [vmem:[%s272 + $0x28] sm:$0xff] %v623
        %640 = vst [vmem:[%s272 + $0x30] sm:$0xff] %v624
        %641 = vst [vmem:[%s272 + $0x38] sm:$0xff] %v625
        %642 = vst [vmem:[%s272 + $0x40] sm:$0xff] %v626
        %643 = vst [vmem:[%s272 + $0x48] sm:$0xff] %v627
        %644 = vst [vmem:[%s272 + $0x50] sm:$0xff] %v628
        %645 = vst [vmem:[%s272 + $0x58] sm:$0xff] %v629
        %646 = vst [vmem:[%s272 + $0x60] sm:$0xff] %v630
        %647 = vst [vmem:[%s272 + $0x68] sm:$0xff] %v631
        %648 = vst [vmem:[%s272 + $0x70] sm:$0xff] %v632
        %649 = vst [vmem:[%s272 + $0x78] sm:$0xff] %v633
        %s650 = sand.u32 %s181, 1
        %s651 = scalar_lea.sflag [#allocation3], %s650
        %s652 = sand.u32 %s181, 1
        %s653 = smul.addr %s652, 128
        %s654 = scalar_lea.vmem [#allocation2], %s653
        // Predicated region
        $region49: #{tpu_custom_call.1} parent=47 // pred_check
          %p655 = pneg %p191
        $region50: #{tpu_custom_call.1} parent=47 // pred_check_branch
          %657 = sbr.rel (%p655) target = $region52
        $region51: #{tpu_custom_call.1} parent=47 // pred_region
          %s658 = smul.u32 16, %s21
          %660 = vsyncadd %s651, 0
          %s661 = smul.addr %s658, 8
          %s662 = scalar_lea.hbm %s7, %s661
          %s663 = sshll.u32 %s654, 4
          %s664 = int_to_ptr.vmem [resolvable:$true] %s663
          %s665 = sshll.u32 %s662, 4
          %s666 = int_to_ptr.hbm [resolvable:$true] %s665
          %671 = dma.vmem_to_hbm [thread:$0]  %s664, 2048, %s666, %s651, 128, 128, 8
        $region52: #{tpu_custom_call.1} parent=47 // pred_fallthru
          _
      $region48: #{tpu_custom_call.1} parent=5 // pred_fallthru
        _
      %p672 = scmp.le.s32.totalorder 2, %s16
      // Predicated region
      $region53: #{tpu_custom_call.1} parent=5 // pred_check
        %p673 = pneg %p672
      $region54: #{tpu_custom_call.1} parent=5 // pred_check_branch
        %675 = sbr.rel (%p673) target = $region56
      $region55: #{tpu_custom_call.1} parent=5 // pred_region
        %s676 = ssub.s32 %s16, 2
        // Predicated region
        $region57: #{tpu_custom_call.1} parent=55 // pred_check
          %p677 = pneg %p197
        $region58: #{tpu_custom_call.1} parent=55 // pred_check_branch
          %679 = sbr.rel (%p677) target = $region60
        $region59: #{tpu_custom_call.1} parent=55 // pred_region
          %s680 = sand.u32 %s182, 1
          %s681 = scalar_lea.sflag [#allocation3], %s680
          %s682 = sand.u32 %s182, 1
          %s683 = smul.addr %s682, 128
          %s684 = scalar_lea.vmem [#allocation2], %s683
          %686 = dma.done %s681, 2048
        $region60: #{tpu_custom_call.1} parent=55 // pred_fallthru
          _
      $region56: #{tpu_custom_call.1} parent=5 // pred_fallthru
        _
    $region6: #{tpu_custom_call.1} parent=1 // loop_footer
      %s20 = sadd.s32 1, %s16
    $region7: #{tpu_custom_call.1} parent=1 // loop_footer_branch
      %15 = sbr.rel target = $region3
    $region8: #{tpu_custom_call.1} parent=1 // loop_exit
      _
    %687 = vsyncpa [#allocation3], 1
    %s688 = scalar_lea.sflag [#allocation3], 1
    %689 = vsyncpa %s688, 1

</llo_original>
